<compile_context>
chip_gen: v7x
topology: tpu7x:2x2x1
jax: 0.10.0
libtpu: 0.0.40
codegen_flags: <defaults>
</compile_context>

<pallas_src>
import functools

import jax
import jax.numpy as jnp
import numpy as np
from jax.experimental import pallas as pl
from jax.experimental.pallas import tpu as pltpu


# ----------------------------------------------------------------------------
# Fused Pallas kernel: all heads x all conv layers in one body.
# ----------------------------------------------------------------------------
def _fused_sep_head_kernel(x_ref, *refs, L, K, num_layers):
    # x_ref  : (rows, Cin)        bf16, rows = batch_block * L (batch folded into M)
    # refs   : W_0..W_{n-1}       (K*Cin_l, Cout_l) bf16 folded conv(+BN) weights
    #          t_0..t_{n-1}       (1, Cout_l)       f32  folded bias / BN shift
    #          o_ref              (rows, cout_pad)  f32  lane-dense output slab
    w_refs = refs[:num_layers]
    t_refs = refs[num_layers:2 * num_layers]
    o_ref = refs[2 * num_layers]

    pad = K // 2
    rows = x_ref.shape[0]

    # 'same'-padding masks computed in-kernel.  Each grid block holds WHOLE
    # sequences (rows = bb*L, block offset multiple of L), so row r within the
    # block sits at position r % L of its sequence.
    pos = jax.lax.broadcasted_iota(jnp.int32, (rows, 1), 0) % L
    keep = {}
    for k in range(K):
        d = k - pad
        if d != 0:
            keep[d] = jnp.logical_and(pos + d >= 0, pos + d < L)   # (rows, 1) bool

    # Layer-0 activation arrives in bf16 (HBM/VMEM savings); lift to f32 once so
    # the sublane rolls below always act on 32-bit data (exact, values already
    # bf16-representable).
    h = x_ref[...].astype(jnp.float32)                              # (rows, Cin) f32

    for li in range(num_layers):
        w_ref = w_refs[li]
        cin = h.shape[1]
        cout = w_ref.shape[1]
        # Roll whichever side is narrower: XLU traffic scales with the rolled width.
        roll_output = cout < cin
        hb = h.astype(jnp.bfloat16) if roll_output else None        # single cast

        acc = None
        for k in range(K):
            d = k - pad
            wk = w_ref[pl.ds(k * cin, cin), :]                      # static slice
            if d == 0:
                src = hb if roll_output else h.astype(jnp.bfloat16)
                y = jnp.dot(src, wk, preferred_element_type=jnp.float32)
            elif roll_output:
                # compute then shift/mask the (narrow) f32 output contribution
                y = jnp.dot(hb, wk, preferred_element_type=jnp.float32)
                y = pltpu.roll(y, shift=(-d) % rows, axis=0)        # y[r] <- y[r + d]
                y = jnp.where(keep[d], y, 0.0)
            else:
                # shift/mask the f32 input tap, cast just that tap to bf16
                tap = pltpu.roll(h, shift=(-d) % rows, axis=0)      # tap[r] = h[r + d]
                tap = jnp.where(keep[d], tap, 0.0)
                y = jnp.dot(tap.astype(jnp.bfloat16), wk,
                            preferred_element_type=jnp.float32)
            acc = y if acc is None else acc + y

        acc = acc + t_refs[li][...]
        if li < num_layers - 1:                                     # ReLU on all but last
            h = jnp.maximum(acc, 0.0)                               # stays on-chip (f32)
        else:
            o_ref[...] = acc.astype(o_ref.dtype)


def _pick_batch_block(B, L):
    """Largest bb dividing B with >=2 grid steps, rows = bb*L <= 4096 and rows%16==0."""
    for bb in range(B, 0, -1):
        if B % bb:
            continue
        rows = bb * L
        if rows % 16:
            continue
        if rows <= 4096 and (B // bb >= 2 or B == 1):
            return bb
    return B                       # single block: block shape == full array (always legal)


def fused_sep_head_pallas(x_flat, weights, shifts, *, L, K, batch_block=None):
    """x_flat: (B*L, Cin) bf16; weights[l]: (K*Cin_l, Cout_l) bf16; shifts[l]: (1, Cout_l) f32."""
    BL, Cin = x_flat.shape
    assert BL % L == 0
    B = BL // L
    bb = _pick_batch_block(B, L) if batch_block is None else batch_block
    assert B % bb == 0, "batch_block must divide the batch size"
    rows = bb * L
    steps = B // bb
    if steps > 1:
        assert rows % 16 == 0, "rows per block must be a multiple of 16 (bf16 sublane tile)"
    num_layers = len(weights)
    cout_pad = int(weights[-1].shape[1])           # already padded to a multiple of 128

    kernel = functools.partial(_fused_sep_head_kernel, L=L, K=K, num_layers=num_layers)

    in_specs = [pl.BlockSpec((rows, Cin), lambda i: (i, 0))]
    in_specs += [pl.BlockSpec(w.shape, lambda i: (0, 0)) for w in weights]
    in_specs += [pl.BlockSpec(t.shape, lambda i: (0, 0)) for t in shifts]

    # Scheduling hint + VMEM budget (re-derived so it also fits v7x's 64 MiB VMEM).
    w_bytes = (sum(int(np.prod(w.shape)) * 2 for w in weights)
               + sum(int(np.prod(t.shape)) * 4 for t in shifts))
    flops = sum(2 * BL * int(w.shape[0]) * int(w.shape[1]) for w in weights)
    bytes_accessed = BL * Cin * 2 + w_bytes + BL * cout_pad * 4
    widest = max([Cin, cout_pad] + [int(w.shape[1]) for w in weights])
    tmp_bytes = 6 * rows * widest * 4                     # live h / taps / acc temporaries
    vmem_est = 2 * (2 * rows * Cin * 2 + 2 * rows * cout_pad * 4 + 2 * w_bytes + tmp_bytes)
    vmem_limit = int(min(64 << 20, max(32 << 20, vmem_est)))

    return pl.pallas_call(
        kernel,
        out_shape=jax.ShapeDtypeStruct((BL, cout_pad), jnp.float32),
        grid=(steps,),
        in_specs=in_specs,
        out_specs=pl.BlockSpec((rows, cout_pad), lambda i: (i, 0)),
        compiler_params=pltpu.CompilerParams(
            dimension_semantics=("parallel",),
            vmem_limit_bytes=vmem_limit),
        cost_estimate=pl.CostEstimate(flops=flops, transcendentals=0,
                                      bytes_accessed=bytes_accessed),
    )(x_flat, *weights, *shifts)


# ----------------------------------------------------------------------------
# Deterministic parameter construction (mirrors SeparateHead_Transfusion.__init__)
# ----------------------------------------------------------------------------
def make_head_params(key, cur_name, input_channels, head_channels, kernel_size,
                     out_channels, num_conv, init_bias=-2.19, use_bias=False):
    layers = []
    cin = input_channels
    eps = 1e-5
    for _ in range(num_conv - 1):
        key, k1, k2, k3, k4, k5 = jax.random.split(key, 6)
        w_oik = 0.1 * jax.random.normal(k1, (head_channels, cin, kernel_size), jnp.float32)
        gamma = 1.0 + 0.1 * jax.random.normal(k2, (head_channels,), jnp.float32)
        beta = 0.1 * jax.random.normal(k3, (head_channels,), jnp.float32)
        rmean = 0.1 * jax.random.normal(k4, (head_channels,), jnp.float32)
        rvar = jnp.abs(jax.random.normal(k5, (head_channels,), jnp.float32)) + 0.5
        scale = gamma / jnp.sqrt(rvar + eps)            # BN (eval) per-channel scale
        shift = beta - rmean * scale                    # BN (eval) per-channel shift
        w_fold = w_oik * scale[:, None, None]           # BN scale folded into the conv
        layers.append(dict(w_oik=w_oik, scale=scale, shift=shift, w_fold=w_fold, relu=True))
        cin = head_channels

    key, k1, k2 = jax.random.split(key, 3)
    w_oik = 0.1 * jax.random.normal(k1, (out_channels, cin, kernel_size), jnp.float32)
    if 'hm' in cur_name:
        bias = jnp.full((out_channels,), init_bias, jnp.float32)
    else:
        bias = 0.1 * jax.random.normal(k2, (out_channels,), jnp.float32)
    layers.append(dict(w_oik=w_oik, scale=jnp.ones((out_channels,), jnp.float32),
                       shift=bias, w_fold=w_oik, relu=False))
    return layers, key


def build_fused_params(head_params, input_channels, head_channels, kernel_size,
                       lane_pad=128):
    """Pre-compute (once) the fused per-layer weight matrices / shifts for the kernel."""
    names = list(head_params.keys())
    H = len(names)
    num_conv = len(head_params[names[0]])
    for n in names:
        assert len(head_params[n]) == num_conv, "fused kernel assumes all heads share num_conv"
    K = kernel_size
    assert K % 2 == 1, "kernel_size must be odd for PyTorch 'same' padding semantics"
    Ch = head_channels

    couts = [int(head_params[n][-1]['w_oik'].shape[0]) for n in names]
    offsets = np.concatenate([[0], np.cumsum(couts)]).astype(np.int64)
    sum_cout = int(offsets[-1])
    # Lane-dense output slab: pad the final layer's columns to a multiple of 128.
    cout_pad = ((sum_cout + lane_pad - 1) // lane_pad) * lane_pad

    weights, shifts = [], []
    for li in range(num_conv):
        is_last = (li == num_conv - 1)
        cin_tot = input_channels if li == 0 else H * Ch
        cout_tot = cout_pad if is_last else H * Ch
        Wm = np.zeros((K * cin_tot, cout_tot), np.float32)
        tv = np.zeros((cout_tot,), np.float32)
        for hi, n in enumerate(names):
            lyr = head_params[n][li]
            wf = np.asarray(lyr['w_fold'])              # (Co, Ci, K), BN already folded
            Co, Ci, _ = wf.shape
            ci_off = 0 if li == 0 else hi * Ch          # layer 0: every head reads full x
            co_off = int(offsets[hi]) if is_last else hi * Ch
            for k in range(K):                          # tap-major rows: row = k*cin_tot + ci
                Wm[k * cin_tot + ci_off: k * cin_tot + ci_off + Ci,
                   co_off: co_off + Co] = wf[:, :, k].T
            tv[co_off: co_off + Co] = np.asarray(lyr['shift'])
        weights.append(jnp.asarray(Wm).astype(jnp.bfloat16))
        shifts.append(jnp.asarray(tv).reshape(1, cout_tot))

    slices = {n: (int(offsets[i]), couts[i]) for i, n in enumerate(names)}
    return dict(weights=weights, shifts=shifts, slices=slices, K=K,
                sum_cout=sum_cout, cout_pad=cout_pad)


# ----------------------------------------------------------------------------
# Forward passes
# ----------------------------------------------------------------------------
def separate_head_forward(x_ncl, fused, batch_block=None):
    """Mirrors SeparateHead_Transfusion.forward: dict of (B, Cout, L) per head."""
    B, Cin, L = x_ncl.shape
    # NCL -> (B*L, C) rows, pre-cast to bf16 (halves x HBM read; masks are 0/1 so
    # the layer-0 math is bit-identical to casting inside the kernel).
    x_flat = jnp.transpose(x_ncl, (0, 2, 1)).reshape(B * L, Cin).astype(jnp.bfloat16)
    slab = fused_sep_head_pallas(x_flat, fused['weights'], fused['shifts'],
                                 L=L, K=fused['K'], batch_block=batch_block)
    slab = slab.reshape(B, L, fused['cout_pad'])
    out = {}
    for name, (off, c) in fused['slices'].items():       # lane padding never read
        out[name] = jnp.transpose(slab[:, :, off:off + c], (0, 2, 1))  # -> NCL
    return out


def head_forward_ref_f32(x_ncl, layers, kernel_size):
    """Exact f32 reference for one head: Conv1d -> BN(eval) -> ReLU stack."""
    pad = kernel_size // 2
    y = x_ncl
    for lyr in layers:
        y = jax.lax.conv_general_dilated(
            y, lyr['w_oik'], window_strides=(1,), padding=[(pad, pad)],
            dimension_numbers=('NCH', 'OIH', 'NCH'))
        y = y * lyr['scale'][None, :, None] + lyr['shift'][None, :, None]
        if lyr['relu']:
            y = jnp.maximum(y, 0.0)
    return y


def head_forward_ref_bf16(x_ncl, layers, kernel_size):
    """Reference matching the kernel arithmetic: BN folded into weights, bf16
    matmul inputs, f32 accumulation and epilogue."""
    pad = kernel_size // 2
    y = x_ncl
    for lyr in layers:
        y = jax.lax.conv_general_dilated(
            y.astype(jnp.bfloat16), lyr['w_fold'].astype(jnp.bfloat16),
            window_strides=(1,), padding=[(pad, pad)],
            dimension_numbers=('NCH', 'OIH', 'NCH'),
            preferred_element_type=jnp.float32)
        y = y + lyr['shift'][None, :, None]
        if lyr['relu']:
            y = jnp.maximum(y, 0.0)
    return y


# ----------------------------------------------------------------------------
if __name__ == "__main__":
    def run_case(case_name, B, Cin, Ch, K, L, sep_head_dict, key):
        key, xk = jax.random.split(key)
        x = jax.random.normal(xk, (B, Cin, L), jnp.float32)     # NCL like PyTorch

        head_params = {}
        for name, cfg in sep_head_dict.items():
            layers, key = make_head_params(key, name, Cin, Ch, K,
                                           cfg['out_channels'], cfg['num_conv'])
            head_params[name] = layers

        fused = build_fused_params(head_params, Cin, Ch, K)
        out = separate_head_forward(x, fused)
        jax.block_until_ready(out)

        # Correctness: tight check vs a bf16-matched JAX reference (same matmul
        # inputs as the kernel), loose sanity check vs the exact f32 module math.
        for name, layers in head_params.items():
            got = np.asarray(out[name])
            ref_bf16 = np.asarray(head_forward_ref_bf16(x, layers, K))
            ref_f32 = np.asarray(head_forward_ref_f32(x, layers, K))
            np.testing.assert_allclose(got, ref_bf16, rtol=2e-3, atol=2e-3,
                                       err_msg=f"{case_name}/{name}")
            np.testing.assert_allclose(got, ref_f32, rtol=5e-2, atol=1e-1,
                                       err_msg=f"{case_name}/{name}")
            assert out[name].shape == (B, sep_head_dict[name]['out_channels'], L)
        return key

    key = jax.random.PRNGKey(0)

    # Case 1: small module-consistent shapes (num_conv=2); exercises the
    # input-roll path for every layer.
    key = run_case("case1", B=2, Cin=32, Ch=32, K=3, L=16,
                   sep_head_dict={'hm':     {'out_channels': 3, 'num_conv': 2},
                                  'center': {'out_channels': 2, 'num_conv': 2},
                                  'dim':    {'out_channels': 3, 'num_conv': 2}},
                   key=key)

    # Case 2: Cin==Ch (required by the module for num_conv>2), 3 convs per head;
    # the final layer has cin=H*Ch=192 > padded cout=128, exercising the
    # output-roll path and the block-diagonal hidden layer.
    key = run_case("case2", B=2, Cin=64, Ch=64, K=3, L=16,
                   sep_head_dict={'hm':     {'out_channels': 2, 'num_conv': 3},
                                  'center': {'out_channels': 2, 'num_conv': 3},
                                  'dim':    {'out_channels': 3, 'num_conv': 3}},
                   key=key)

    print("KERNEL_OK")
</pallas_src>

<mosaic_0001>
module attributes {stable_mosaic.version = 11 : i64} {
  func.func @_fused_sep_head_kernel(%arg0: i32, %arg1: memref<16x32xbf16, #tpu.memory_space<vmem>>, %arg2: memref<96x96xbf16, #tpu.memory_space<vmem>>, %arg3: memref<288x128xbf16, #tpu.memory_space<vmem>>, %arg4: memref<1x96xf32, #tpu.memory_space<vmem>>, %arg5: memref<1x128xf32, #tpu.memory_space<vmem>>, %arg6: memref<16x128xf32, #tpu.memory_space<vmem>>) attributes {dimension_semantics = [#tpu.dimension_semantics<parallel>], iteration_bounds = array<i64: 2>, scalar_prefetch = 0 : i64, scratch_operands = 0 : i64, tpu.core_type = #tpu.core_type<tc>, window_params = [{transform_indices = @transform_0, window_bounds = array<i64: 16, 32>}, {pipeline_mode = #tpu.pipeline_mode<synchronous>, transform_indices = @transform_1, window_bounds = array<i64: 96, 96>}, {pipeline_mode = #tpu.pipeline_mode<synchronous>, transform_indices = @transform_2, window_bounds = array<i64: 288, 128>}, {pipeline_mode = #tpu.pipeline_mode<synchronous>, transform_indices = @transform_3, window_bounds = array<i64: 1, 96>}, {pipeline_mode = #tpu.pipeline_mode<synchronous>, transform_indices = @transform_4, window_bounds = array<i64: 1, 128>}, {transform_indices = @transform_5, window_bounds = array<i64: 16, 128>}]} {
    %0 = tpu.iota {dimensions = array<i32: 0>} : vector<16x1xi32>
    %c16_i32 = arith.constant 16 : i32
    %c0_i32 = arith.constant 0 : i32
    %1 = arith.cmpi eq, %c16_i32, %c0_i32 : i32
    %c1_i32 = arith.constant 1 : i32
    %2 = arith.select %1, %c1_i32, %c16_i32 : i32
    %3 = vector.broadcast %2 : i32 to vector<16x1xi32>
    %4 = arith.remsi %0, %3 : vector<16x1xi32>
    %c0_i32_0 = arith.constant 0 : i32
    %5 = vector.broadcast %c0_i32_0 : i32 to vector<16x1xi32>
    %6 = arith.cmpi ne, %4, %5 : vector<16x1xi32>
    %c0_i32_1 = arith.constant 0 : i32
    %7 = vector.broadcast %c0_i32_1 : i32 to vector<16x1xi32>
    %8 = arith.cmpi slt, %4, %7 : vector<16x1xi32>
    %c0_i32_2 = arith.constant 0 : i32
    %9 = arith.cmpi slt, %2, %c0_i32_2 : i32
    %10 = vector.broadcast %9 : i1 to vector<16x1xi1>
    %11 = vector.broadcast %10 : vector<16x1xi1> to vector<16x1xi1>
    %12 = arith.xori %8, %11 : vector<16x1xi1>
    %13 = arith.andi %12, %6 : vector<16x1xi1>
    %14 = vector.broadcast %2 : i32 to vector<16x1xi32>
    %15 = arith.addi %4, %14 : vector<16x1xi32>
    %16 = arith.select %13, %15, %4 : vector<16x1xi1>, vector<16x1xi32>
    %c-1_i32 = arith.constant -1 : i32
    %17 = vector.broadcast %c-1_i32 : i32 to vector<16x1xi32>
    %18 = arith.addi %16, %17 : vector<16x1xi32>
    %c0_i32_3 = arith.constant 0 : i32
    %19 = vector.broadcast %c0_i32_3 : i32 to vector<16x1xi32>
    %20 = arith.cmpi sge, %18, %19 : vector<16x1xi32>
    %c-1_i32_4 = arith.constant -1 : i32
    %21 = vector.broadcast %c-1_i32_4 : i32 to vector<16x1xi32>
    %22 = arith.addi %16, %21 : vector<16x1xi32>
    %c16_i32_5 = arith.constant 16 : i32
    %23 = vector.broadcast %c16_i32_5 : i32 to vector<16x1xi32>
    %24 = arith.cmpi slt, %22, %23 : vector<16x1xi32>
    %25 = arith.andi %20, %24 : vector<16x1xi1>
    %c1_i32_6 = arith.constant 1 : i32
    %26 = vector.broadcast %c1_i32_6 : i32 to vector<16x1xi32>
    %27 = arith.addi %16, %26 : vector<16x1xi32>
    %c0_i32_7 = arith.constant 0 : i32
    %28 = vector.broadcast %c0_i32_7 : i32 to vector<16x1xi32>
    %29 = arith.cmpi sge, %27, %28 : vector<16x1xi32>
    %c1_i32_8 = arith.constant 1 : i32
    %30 = vector.broadcast %c1_i32_8 : i32 to vector<16x1xi32>
    %31 = arith.addi %16, %30 : vector<16x1xi32>
    %c16_i32_9 = arith.constant 16 : i32
    %32 = vector.broadcast %c16_i32_9 : i32 to vector<16x1xi32>
    %33 = arith.cmpi slt, %31, %32 : vector<16x1xi32>
    %34 = arith.andi %29, %33 : vector<16x1xi1>
    %c0 = arith.constant 0 : index
    %c0_10 = arith.constant 0 : index
    %35 = vector.load %arg1[%c0, %c0_10] : memref<16x32xbf16, #tpu.memory_space<vmem>>, vector<16x32xbf16>
    %36 = arith.extf %35 : vector<16x32xbf16> to vector<16x32xf32>
    %c0_11 = arith.constant 0 : index
    %c0_12 = arith.constant 0 : index
    %37 = vector.load %arg2[%c0_11, %c0_12] : memref<96x96xbf16, #tpu.memory_space<vmem>>, vector<32x96xbf16>
    %c1_i32_13 = arith.constant 1 : i32
    %38 = tpu.dynamic_rotate %36 by %c1_i32_13 dim 0 : vector<16x32xf32>, i32 -> vector<16x32xf32>
    %cst = arith.constant 0.000000e+00 : f32
    %39 = vector.shape_cast %25 : vector<16x1xi1> to vector<16x1xi1>
    %40 = vector.broadcast %39 : vector<16x1xi1> to vector<16x32xi1>
    %41 = vector.broadcast %cst : f32 to vector<16x32xf32>
    %42 = arith.select %40, %38, %41 : vector<16x32xi1>, vector<16x32xf32>
    %43 = arith.truncf %42 : vector<16x32xf32> to vector<16x32xbf16>
    %cst_14 = arith.constant dense<0.000000e+00> : vector<16x96xf32>
    %44 = tpu.matmul %43, %37, %cst_14 {dimension_numbers = #tpu.dot_dimension_numbers<[1], [0], [0], [1], [0, 0, 1, 1], [], []>} : vector<16x32xbf16>, vector<32x96xbf16>, vector<16x96xf32> -> vector<16x96xf32>
    %c32 = arith.constant 32 : index
    %c0_15 = arith.constant 0 : index
    %45 = vector.load %arg2[%c32, %c0_15] : memref<96x96xbf16, #tpu.memory_space<vmem>>, vector<32x96xbf16>
    %46 = arith.truncf %36 : vector<16x32xf32> to vector<16x32xbf16>
    %cst_16 = arith.constant dense<0.000000e+00> : vector<16x96xf32>
    %47 = tpu.matmul %46, %45, %cst_16 {dimension_numbers = #tpu.dot_dimension_numbers<[1], [0], [0], [1], [0, 0, 1, 1], [], []>} : vector<16x32xbf16>, vector<32x96xbf16>, vector<16x96xf32> -> vector<16x96xf32>
    %48 = arith.addf %44, %47 : vector<16x96xf32>
    %c64 = arith.constant 64 : index
    %c0_17 = arith.constant 0 : index
    %49 = vector.load %arg2[%c64, %c0_17] : memref<96x96xbf16, #tpu.memory_space<vmem>>, vector<32x96xbf16>
    %c15_i32 = arith.constant 15 : i32
    %50 = tpu.dynamic_rotate %36 by %c15_i32 dim 0 : vector<16x32xf32>, i32 -> vector<16x32xf32>
    %cst_18 = arith.constant 0.000000e+00 : f32
    %51 = vector.shape_cast %34 : vector<16x1xi1> to vector<16x1xi1>
    %52 = vector.broadcast %51 : vector<16x1xi1> to vector<16x32xi1>
    %53 = vector.broadcast %cst_18 : f32 to vector<16x32xf32>
    %54 = arith.select %52, %50, %53 : vector<16x32xi1>, vector<16x32xf32>
    %55 = arith.truncf %54 : vector<16x32xf32> to vector<16x32xbf16>
    %cst_19 = arith.constant dense<0.000000e+00> : vector<16x96xf32>
    %56 = tpu.matmul %55, %49, %cst_19 {dimension_numbers = #tpu.dot_dimension_numbers<[1], [0], [0], [1], [0, 0, 1, 1], [], []>} : vector<16x32xbf16>, vector<32x96xbf16>, vector<16x96xf32> -> vector<16x96xf32>
    %57 = arith.addf %48, %56 : vector<16x96xf32>
    %c0_20 = arith.constant 0 : index
    %c0_21 = arith.constant 0 : index
    %58 = vector.load %arg4[%c0_20, %c0_21] : memref<1x96xf32, #tpu.memory_space<vmem>>, vector<1x96xf32>
    %59 = vector.broadcast %58 : vector<1x96xf32> to vector<16x96xf32>
    %60 = arith.addf %57, %59 : vector<16x96xf32>
    %cst_22 = arith.constant 0.000000e+00 : f32
    %61 = vector.broadcast %cst_22 : f32 to vector<16x96xf32>
    %62 = arith.maximumf %60, %61 : vector<16x96xf32>
    %c0_23 = arith.constant 0 : index
    %c0_24 = arith.constant 0 : index
    %63 = vector.load %arg3[%c0_23, %c0_24] : memref<288x128xbf16, #tpu.memory_space<vmem>>, vector<96x128xbf16>
    %c1_i32_25 = arith.constant 1 : i32
    %64 = tpu.dynamic_rotate %62 by %c1_i32_25 dim 0 : vector<16x96xf32>, i32 -> vector<16x96xf32>
    %cst_26 = arith.constant 0.000000e+00 : f32
    %65 = vector.shape_cast %25 : vector<16x1xi1> to vector<16x1xi1>
    %66 = vector.broadcast %65 : vector<16x1xi1> to vector<16x96xi1>
    %67 = vector.broadcast %cst_26 : f32 to vector<16x96xf32>
    %68 = arith.select %66, %64, %67 : vector<16x96xi1>, vector<16x96xf32>
    %69 = arith.truncf %68 : vector<16x96xf32> to vector<16x96xbf16>
    %cst_27 = arith.constant dense<0.000000e+00> : vector<16x128xf32>
    %70 = tpu.matmul %69, %63, %cst_27 {dimension_numbers = #tpu.dot_dimension_numbers<[1], [0], [0], [1], [0, 0, 1, 1], [], []>} : vector<16x96xbf16>, vector<96x128xbf16>, vector<16x128xf32> -> vector<16x128xf32>
    %c96 = arith.constant 96 : index
    %c0_28 = arith.constant 0 : index
    %71 = vector.load %arg3[%c96, %c0_28] : memref<288x128xbf16, #tpu.memory_space<vmem>>, vector<96x128xbf16>
    %72 = arith.truncf %62 : vector<16x96xf32> to vector<16x96xbf16>
    %cst_29 = arith.constant dense<0.000000e+00> : vector<16x128xf32>
    %73 = tpu.matmul %72, %71, %cst_29 {dimension_numbers = #tpu.dot_dimension_numbers<[1], [0], [0], [1], [0, 0, 1, 1], [], []>} : vector<16x96xbf16>, vector<96x128xbf16>, vector<16x128xf32> -> vector<16x128xf32>
    %74 = arith.addf %70, %73 : vector<16x128xf32>
    %c192 = arith.constant 192 : index
    %c0_30 = arith.constant 0 : index
    %75 = vector.load %arg3[%c192, %c0_30] : memref<288x128xbf16, #tpu.memory_space<vmem>>, vector<96x128xbf16>
    %c15_i32_31 = arith.constant 15 : i32
    %76 = tpu.dynamic_rotate %62 by %c15_i32_31 dim 0 : vector<16x96xf32>, i32 -> vector<16x96xf32>
    %cst_32 = arith.constant 0.000000e+00 : f32
    %77 = vector.shape_cast %34 : vector<16x1xi1> to vector<16x1xi1>
    %78 = vector.broadcast %77 : vector<16x1xi1> to vector<16x96xi1>
    %79 = vector.broadcast %cst_32 : f32 to vector<16x96xf32>
    %80 = arith.select %78, %76, %79 : vector<16x96xi1>, vector<16x96xf32>
    %81 = arith.truncf %80 : vector<16x96xf32> to vector<16x96xbf16>
    %cst_33 = arith.constant dense<0.000000e+00> : vector<16x128xf32>
    %82 = tpu.matmul %81, %75, %cst_33 {dimension_numbers = #tpu.dot_dimension_numbers<[1], [0], [0], [1], [0, 0, 1, 1], [], []>} : vector<16x96xbf16>, vector<96x128xbf16>, vector<16x128xf32> -> vector<16x128xf32>
    %83 = arith.addf %74, %82 : vector<16x128xf32>
    %c0_34 = arith.constant 0 : index
    %c0_35 = arith.constant 0 : index
    %84 = vector.load %arg5[%c0_34, %c0_35] : memref<1x128xf32, #tpu.memory_space<vmem>>, vector<1x128xf32>
    %85 = vector.broadcast %84 : vector<1x128xf32> to vector<16x128xf32>
    %86 = arith.addf %83, %85 : vector<16x128xf32>
    %c0_36 = arith.constant 0 : index
    %c0_37 = arith.constant 0 : index
    %87 = vector.load %arg6[%c0_36, %c0_37] : memref<16x128xf32, #tpu.memory_space<vmem>>, vector<16x128xf32>
    tpu.vector_store %arg6[%c0_36, %c0_37], %86 {strides = array<i32>} : memref<16x128xf32, #tpu.memory_space<vmem>>, vector<16x128xf32>,
    return
  }
  func.func @transform_0(%arg0: i32) -> (i32, i32) {
    %c0_i32 = arith.constant 0 : i32
    %c0_i32_0 = arith.constant 0 : i32
    return %arg0, %c0_i32 : i32, i32
  }
  func.func @transform_1(%arg0: i32) -> (i32, i32) {
    %c0_i32 = arith.constant 0 : i32
    %c0_i32_0 = arith.constant 0 : i32
    %c0_i32_1 = arith.constant 0 : i32
    return %c0_i32, %c0_i32_0 : i32, i32
  }
  func.func @transform_2(%arg0: i32) -> (i32, i32) {
    %c0_i32 = arith.constant 0 : i32
    %c0_i32_0 = arith.constant 0 : i32
    %c0_i32_1 = arith.constant 0 : i32
    return %c0_i32, %c0_i32_0 : i32, i32
  }
  func.func @transform_3(%arg0: i32) -> (i32, i32) {
    %c0_i32 = arith.constant 0 : i32
    %c0_i32_0 = arith.constant 0 : i32
    %c0_i32_1 = arith.constant 0 : i32
    return %c0_i32, %c0_i32_0 : i32, i32
  }
  func.func @transform_4(%arg0: i32) -> (i32, i32) {
    %c0_i32 = arith.constant 0 : i32
    %c0_i32_0 = arith.constant 0 : i32
    %c0_i32_1 = arith.constant 0 : i32
    return %c0_i32, %c0_i32_0 : i32, i32
  }
  func.func @transform_5(%arg0: i32) -> (i32, i32) {
    %c0_i32 = arith.constant 0 : i32
    %c0_i32_0 = arith.constant 0 : i32
    return %arg0, %c0_i32 : i32, i32
  }
}

</mosaic_0001>

<llo_original>
// kernel: tpu_custom_call.1
$region0: #{tpu_custom_call.1}
  #allocation0 [shape = 'u32[]', space=smem, size = 0x4, offset = 0x4, fixed_abs, tag = 'smem constant byte address 0x4 - core index']
  #allocation1 [shape = 'u32[144,128]{1,0:T(1,128)}', space=vmem, size = 0x12000, scoped, tag = 'internal scratch']
  %s0 = inlined_call_operand.hbm [shape: bf16[32,32], index: 0, kind: input, shape index: {}]
  %s1 = inlined_call_operand.hbm [shape: bf16[96,96], index: 1, kind: input, shape index: {}]
  %s2 = inlined_call_operand.hbm [shape: bf16[288,128], index: 2, kind: input, shape index: {}]
  %s3 = inlined_call_operand.vmem [shape: f32[1,96], index: 3, kind: input, shape index: {}]
  %s4 = inlined_call_operand.vmem [shape: f32[1,128], index: 4, kind: input, shape index: {}]
  %s5 = inlined_call_operand.hbm [shape: f32[32,128], index: 5, kind: output, shape index: {}]
  %s6 = sld [smem:[#allocation0]]
  $region65: #{tpu_custom_call.1} parent=0
    _
  %s8 = ssub.s32 1, %s6
  %s9 = scalar_select 0, %s8, %s6
  $region1: #{tpu_custom_call.1} parent=0
    #allocation2 [shape = 'u8[8192]{0}', space=vmem, size = 0x2000, scoped, tag = 'input window, operand 0']
    #allocation3 [shape = 's32[2]{0}', space=sflag, size = 0x8, scoped, tag = 'scoped memory for tpu_custom_call.1']
    #allocation4 [shape = 's32[2]{0}', space=sflag, size = 0x8, scoped, tag = 'scoped memory for tpu_custom_call.1']
    #allocation5 [shape = 'u8[24576]{0}', space=vmem, size = 0x6000, scoped, tag = 'input window, operand 1, single buffered']
    #allocation6 [shape = 's32[1]{0}', space=sflag, size = 0x4, scoped, tag = 'scoped memory for tpu_custom_call.1']
    #allocation7 [shape = 'u8[73728]{0}', space=vmem, size = 0x12000, scoped, tag = 'input window, operand 2, single buffered']
    #allocation8 [shape = 'u8[16384]{0}', space=vmem, size = 0x4000, scoped, tag = 'output window, operand 0']
    %10 = vsyncpa [#allocation3], 0
    %s11 = scalar_lea.sflag [#allocation3], 1
    %12 = vsyncpa %s11, 0
    %13 = vsyncpa [#allocation6], 0
    %14 = vsyncpa [#allocation4], 0
    %s15 = scalar_lea.sflag [#allocation4], 1
    %16 = vsyncpa %s15, 0
    loop: start=0, step=1, limit=4
    $region2: #{tpu_custom_call.1} parent=1 // loop_pre_header
      _
    $region3: #{tpu_custom_call.1} parent=1 // loop_header
      %s18 = sphi 0, %s22
      %p19 = scmp.ge.s32.totalorder %s18, 4
      %s28 = sphi 0, %s30
      %s31 = sphi 0, %s28
      %s32 = sphi 0, %s31
      %s48 = sphi 0, %s32
      %s52 = sphi 0, %s52
      %s54 = sphi 0, %s52
      %s55 = sphi 0, %s54
      %s69 = sphi 0, %s55
      %s73 = sphi 0, %s73
      %s75 = sphi 0, %s73
      %s76 = sphi 0, %s75
      %s90 = sphi 0, %s76
      %s94 = sphi 0, %s94
      %s96 = sphi 0, %s94
      %s97 = sphi 0, %s96
      %s111 = sphi 0, %s97
      %s115 = sphi 0, %s115
      %s117 = sphi 0, %s115
      %s118 = sphi 0, %s117
      %s132 = sphi 0, %s118
      %s138 = sphi 0, %s140
      %s141 = sphi 0, %s138
      %s142 = sphi 0, %s141
      %s158 = sphi 0, %s142
    $region4: #{tpu_custom_call.1} parent=1 // loop_header_branch
      %21 = sbr.rel (%p19) target = $region8
    $region5: #{tpu_custom_call.1} parent=1 // loop_body
      %s23 = ssub.s32 %s18, 1
      %s24 = ssub.s32 %s18, 2
      %s25 = sadd.s32 %s18, 1
      %s26 = ssub.s32 %s18, %s25
      %p27 = scmp.eq.s32.totalorder %s26, 0
      %s29 = sadd.s32 %s28, 1
      %s30 = scalar_select %p27, %s28, %s29
      %p33 = pneg %p27
      %p34 = scmp.eq.s32.totalorder %s18, 1
      %p35 = por %p33, %p34
      %p36 = scmp.ne.s32.totalorder %s28, %s31
      %p37 = scmp.eq.s32.totalorder %s18, 0
      %p38 = por %p36, %p37
      %p39 = scmp.ne.s32.totalorder %s28, %s31
      %p40 = scmp.eq.s32.totalorder %s23, 1
      %p41 = por %p39, %p40
      %p42 = scmp.ne.s32.totalorder %s31, %s32
      %p43 = scmp.eq.s32.totalorder %s23, 0
      %p44 = por %p42, %p43
      %p45 = scmp.ne.s32.totalorder %s31, %s32
      %p46 = scmp.eq.s32.totalorder %s24, 1
      %p47 = por %p45, %p46
      %p49 = scmp.ne.s32.totalorder %s32, %s48
      %p50 = scmp.eq.s32.totalorder %s24, 0
      %p51 = por %p49, %p50
      %s53 = sadd.s32 %s52, 1
      %p56 = scmp.eq.s32.totalorder %s18, 1
      %p57 = scmp.ne.s32.totalorder %s52, %s54
      %p58 = scmp.eq.s32.totalorder %s18, 0
      %p59 = por %p57, %p58
      %p60 = scmp.ne.s32.totalorder %s52, %s54
      %p61 = scmp.eq.s32.totalorder %s23, 1
      %p62 = por %p60, %p61
      %p63 = scmp.ne.s32.totalorder %s54, %s55
      %p64 = scmp.eq.s32.totalorder %s23, 0
      %p65 = por %p63, %p64
      %p66 = scmp.ne.s32.totalorder %s54, %s55
      %p67 = scmp.eq.s32.totalorder %s24, 1
      %p68 = por %p66, %p67
      %p70 = scmp.ne.s32.totalorder %s55, %s69
      %p71 = scmp.eq.s32.totalorder %s24, 0
      %p72 = por %p70, %p71
      %s74 = sadd.s32 %s73, 1
      %p77 = scmp.eq.s32.totalorder %s18, 1
      %p78 = scmp.ne.s32.totalorder %s73, %s75
      %p79 = scmp.eq.s32.totalorder %s18, 0
      %p80 = por %p78, %p79
      %p81 = scmp.ne.s32.totalorder %s73, %s75
      %p82 = scmp.eq.s32.totalorder %s23, 1
      %p83 = por %p81, %p82
      %p84 = scmp.ne.s32.totalorder %s75, %s76
      %p85 = scmp.eq.s32.totalorder %s23, 0
      %p86 = por %p84, %p85
      %p87 = scmp.ne.s32.totalorder %s75, %s76
      %p88 = scmp.eq.s32.totalorder %s24, 1
      %p89 = por %p87, %p88
      %p91 = scmp.ne.s32.totalorder %s76, %s90
      %p92 = scmp.eq.s32.totalorder %s24, 0
      %p93 = por %p91, %p92
      %s95 = sadd.s32 %s94, 1
      %p98 = scmp.eq.s32.totalorder %s18, 1
      %p99 = scmp.ne.s32.totalorder %s94, %s96
      %p100 = scmp.eq.s32.totalorder %s18, 0
      %p101 = por %p99, %p100
      %p102 = scmp.ne.s32.totalorder %s94, %s96
      %p103 = scmp.eq.s32.totalorder %s23, 1
      %p104 = por %p102, %p103
      %p105 = scmp.ne.s32.totalorder %s96, %s97
      %p106 = scmp.eq.s32.totalorder %s23, 0
      %p107 = por %p105, %p106
      %p108 = scmp.ne.s32.totalorder %s96, %s97
      %p109 = scmp.eq.s32.totalorder %s24, 1
      %p110 = por %p108, %p109
      %p112 = scmp.ne.s32.totalorder %s97, %s111
      %p113 = scmp.eq.s32.totalorder %s24, 0
      %p114 = por %p112, %p113
      %s116 = sadd.s32 %s115, 1
      %p119 = scmp.eq.s32.totalorder %s18, 1
      %p120 = scmp.ne.s32.totalorder %s115, %s117
      %p121 = scmp.eq.s32.totalorder %s18, 0
      %p122 = por %p120, %p121
      %p123 = scmp.ne.s32.totalorder %s115, %s117
      %p124 = scmp.eq.s32.totalorder %s23, 1
      %p125 = por %p123, %p124
      %p126 = scmp.ne.s32.totalorder %s117, %s118
      %p127 = scmp.eq.s32.totalorder %s23, 0
      %p128 = por %p126, %p127
      %p129 = scmp.ne.s32.totalorder %s117, %s118
      %p130 = scmp.eq.s32.totalorder %s24, 1
      %p131 = por %p129, %p130
      %p133 = scmp.ne.s32.totalorder %s118, %s132
      %p134 = scmp.eq.s32.totalorder %s24, 0
      %p135 = por %p133, %p134
      %s136 = ssub.s32 %s18, %s25
      %p137 = scmp.eq.s32.totalorder %s136, 0
      %s139 = sadd.s32 %s138, 1
      %s140 = scalar_select %p137, %s138, %s139
      %p143 = pneg %p137
      %p144 = scmp.eq.s32.totalorder %s18, 1
      %p145 = por %p143, %p144
      %p146 = scmp.ne.s32.totalorder %s138, %s141
      %p147 = scmp.eq.s32.totalorder %s18, 0
      %p148 = por %p146, %p147
      %p149 = scmp.ne.s32.totalorder %s138, %s141
      %p150 = scmp.eq.s32.totalorder %s23, 1
      %p151 = por %p149, %p150
      %p152 = scmp.ne.s32.totalorder %s141, %s142
      %p153 = scmp.eq.s32.totalorder %s23, 0
      %p154 = por %p152, %p153
      %p155 = scmp.ne.s32.totalorder %s141, %s142
      %p156 = scmp.eq.s32.totalorder %s24, 1
      %p157 = por %p155, %p156
      %p159 = scmp.ne.s32.totalorder %s142, %s158
      %p160 = scmp.eq.s32.totalorder %s24, 0
      %p161 = por %p159, %p160
      %p162 = scmp.le.s32.totalorder 1, %s18
      %p163 = scmp.lt.s32.totalorder %s18, 3
      %p164 = pnand %p162, %p163
      %p165 = pneg %p164
      // Predicated region
      $region9: #{tpu_custom_call.1} parent=5 // pred_check
        _
      $region10: #{tpu_custom_call.1} parent=5 // pred_check_branch
        %167 = sbr.rel (%p164) target = $region12
      $region11: #{tpu_custom_call.1} parent=5 // pred_region
        %s168 = ssub.s32 %s18, 1
        // Predicated region
        $region13: #{tpu_custom_call.1} parent=11 // pred_check
          %p169 = pneg %p65
        $region14: #{tpu_custom_call.1} parent=11 // pred_check_branch
          %171 = sbr.rel (%p169) target = $region16
        $region15: #{tpu_custom_call.1} parent=11 // pred_region
          %s173 = ssub.s32 768, 768
          %174 = vsyncadd [#allocation6], %s173
          %s175 = sshll.u32 [#allocation5], 4
          %s176 = int_to_ptr.vmem [resolvable:$true] %s175
          %181 = dma.hbm_to_vmem [thread:$0]  %s1, 768, %s176, [#allocation6], 64, 64, 4
        $region16: #{tpu_custom_call.1} parent=11 // pred_fallthru
          _
        // Predicated region
        $region17: #{tpu_custom_call.1} parent=11 // pred_check
          %p182 = pneg %p86
        $region18: #{tpu_custom_call.1} parent=11 // pred_check_branch
          %184 = sbr.rel (%p182) target = $region20
        $region19: #{tpu_custom_call.1} parent=11 // pred_region
          %s186 = ssub.s32 2304, 2304
          %187 = vsyncadd [#allocation6], %s186
          %s188 = sshll.u32 [#allocation7], 4
          %s189 = int_to_ptr.vmem [resolvable:$true] %s188
          %194 = dma.hbm_to_vmem [thread:$0]  %s2, 2304, %s189, [#allocation6], 64, 64, 4
        $region20: #{tpu_custom_call.1} parent=11 // pred_fallthru
          _
        // Predicated region
        $region21: #{tpu_custom_call.1} parent=11 // pred_check
          %p195 = pneg %p107
        $region22: #{tpu_custom_call.1} parent=11 // pred_check_branch
          %197 = sbr.rel (%p195) target = $region24
        $region23: #{tpu_custom_call.1} parent=11 // pred_region
          _
        $region24: #{tpu_custom_call.1} parent=11 // pred_fallthru
          _
        // Predicated region
        $region25: #{tpu_custom_call.1} parent=11 // pred_check
          %p198 = pneg %p128
        $region26: #{tpu_custom_call.1} parent=11 // pred_check_branch
          %200 = sbr.rel (%p198) target = $region28
        $region27: #{tpu_custom_call.1} parent=11 // pred_region
          _
        $region28: #{tpu_custom_call.1} parent=11 // pred_fallthru
          _
      $region12: #{tpu_custom_call.1} parent=5 // pred_fallthru
        _
      %p201 = scmp.lt.s32.totalorder %s18, 2
      // Predicated region
      $region29: #{tpu_custom_call.1} parent=5 // pred_check
        %p202 = pneg %p201
      $region30: #{tpu_custom_call.1} parent=5 // pred_check_branch
        %204 = sbr.rel (%p202) target = $region32
      $region31: #{tpu_custom_call.1} parent=5 // pred_region
        // Predicated region
        $region33: #{tpu_custom_call.1} parent=31 // pred_check
          %p205 = pneg %p38
        $region34: #{tpu_custom_call.1} parent=31 // pred_check_branch
          %207 = sbr.rel (%p205) target = $region36
        $region35: #{tpu_custom_call.1} parent=31 // pred_region
          %s208 = sand.u32 %s28, 1
          %s209 = scalar_lea.sflag [#allocation3], %s208
          %s210 = sand.u32 %s28, 1
          %s211 = smul.addr %s210, 8
          %s212 = scalar_lea.vmem [#allocation2], %s211
          %s213 = smul.u32 2, %s18
          %s215 = ssub.s32 128, 128
          %216 = vsyncadd %s209, %s215
          %s217 = smul.addr %s213, 64
          %s218 = scalar_lea.hbm %s0, %s217
          %s219 = sshll.u32 %s212, 4
          %s220 = int_to_ptr.vmem [resolvable:$true] %s219
          %225 = dma.hbm_to_vmem [thread:$0]  %s218, 128, %s220, %s209, 64, 64, 4
        $region36: #{tpu_custom_call.1} parent=31 // pred_fallthru
          _
      $region32: #{tpu_custom_call.1} parent=5 // pred_fallthru
        _
      %p226 = scmp.le.s32.totalorder 1, %s18
      %p227 = scmp.lt.s32.totalorder %s18, 3
      %p228 = pnand %p226, %p227
      %p229 = pneg %p228
      // Predicated region
      $region37: #{tpu_custom_call.1} parent=5 // pred_check
        _
      $region38: #{tpu_custom_call.1} parent=5 // pred_check_branch
        %231 = sbr.rel (%p228) target = $region40
      $region39: #{tpu_custom_call.1} parent=5 // pred_region
        %s232 = ssub.s32 %s18, 1
        %s233 = sand.u32 %s31, 1
        %s234 = scalar_lea.sflag [#allocation3], %s233
        %s235 = sand.u32 %s31, 1
        %s236 = smul.addr %s235, 8
        %s237 = scalar_lea.vmem [#allocation2], %s236
        // Predicated region
        $region41: #{tpu_custom_call.1} parent=39 // pred_check
          %p238 = pneg %p44
        $region42: #{tpu_custom_call.1} parent=39 // pred_check_branch
          %240 = sbr.rel (%p238) target = $region44
        $region43: #{tpu_custom_call.1} parent=39 // pred_region
          %241 = dma.done %s234, 128
        $region44: #{tpu_custom_call.1} parent=39 // pred_fallthru
          _
        // Predicated region
        $region45: #{tpu_custom_call.1} parent=39 // pred_check
          %p242 = pneg %p65
        $region46: #{tpu_custom_call.1} parent=39 // pred_check_branch
          %244 = sbr.rel (%p242) target = $region48
        $region47: #{tpu_custom_call.1} parent=39 // pred_region
          %245 = dma.done [#allocation6], 768
        $region48: #{tpu_custom_call.1} parent=39 // pred_fallthru
          _
        // Predicated region
        $region49: #{tpu_custom_call.1} parent=39 // pred_check
          %p246 = pneg %p86
        $region50: #{tpu_custom_call.1} parent=39 // pred_check_branch
          %248 = sbr.rel (%p246) target = $region52
        $region51: #{tpu_custom_call.1} parent=39 // pred_region
          %249 = dma.done [#allocation6], 2304
        $region52: #{tpu_custom_call.1} parent=39 // pred_fallthru
          _
        %s250 = sand.u32 %s31, 1
        %s251 = scalar_lea.sflag [#allocation3], %s250
        %s252 = sand.u32 %s31, 1
        %s253 = smul.addr %s252, 8
        %s254 = scalar_lea.vmem [#allocation2], %s253
        %p255 = pneg %p44
        %p256 = pneg %p41
        %p257 = pneg %p65
        %p258 = pneg %p62
        %p259 = pneg %p86
        %p260 = pneg %p83
        %p261 = pneg %p107
        %p262 = pneg %p104
        %p263 = pneg %p128
        %p264 = pneg %p125
        %p265 = pneg %p154
        %p266 = pneg %p151
        %s267 = sand.u32 %s141, 1
        %s268 = scalar_lea.sflag [#allocation4], %s267
        %s269 = sand.u32 %s141, 1
        %s270 = smul.addr %s269, 16
        %s271 = scalar_lea.vmem [#allocation8], %s270
        %s272 = smul.u32 2, %s23
        %s273 = smul.u32 2, %s23
        %v275 = vlaneseq
        %v276 = vshrl.u32 %v275, 7
        %v277 = vadd.s32 %v276, 8
        %vm278 = vcmp.lt.s32.totalorder %v276, 0
        %v279 = vsub.s32 0, %v276
        %v280 = vsel %vm278, %v279, %v276
        %v281 = vshrl.u32 %v280, 4
        %v282 = vand.u32 %v280, 15
        %v283 = vsub.s32 0, %v282
        %v284 = vsel %vm278, %v283, %v282
        %vm285 = vcmp.lt.s32.totalorder %v277, 0
        %v286 = vsub.s32 0, %v277
        %v287 = vsel %vm285, %v286, %v277
        %v288 = vshrl.u32 %v287, 4
        %v289 = vand.u32 %v287, 15
        %v290 = vsub.s32 0, %v289
        %v291 = vsel %vm285, %v290, %v289
        %vm292 = vcmp.ne.s32.totalorder %v284, 0
        %vm293 = vcmp.ne.s32.totalorder %v291, 0
        %vm294 = vcmp.lt.s32.totalorder %v284, 0
        %vm295 = vcmp.lt.s32.totalorder %v291, 0
        %vm296 = vmand %vm294, %vm292
        %vm297 = vmand %vm295, %vm293
        %v298 = vadd.s32 %v284, 16
        %v299 = vadd.s32 %v291, 16
        %v300 = vsel %vm296, %v298, %v284
        %v301 = vsel %vm297, %v299, %v291
        %v302 = vadd.s32 %v300, 4294967295
        %v303 = vadd.s32 %v301, 4294967295
        %vm304 = vcmp.ge.s32.totalorder %v302, 0
        %vm305 = vcmp.ge.s32.totalorder %v303, 0
        %vm306 = vcmp.lt.s32.totalorder %v302, 16
        %vm307 = vcmp.lt.s32.totalorder %v303, 16
        %vm308 = vmand %vm304, %vm306
        %vm309 = vmand %vm305, %vm307
        %v310 = vadd.s32 %v300, 1
        %v311 = vadd.s32 %v301, 1
        %vm312 = vcmp.ge.s32.totalorder %v310, 0
        %vm313 = vcmp.ge.s32.totalorder %v311, 0
        %vm314 = vcmp.lt.s32.totalorder %v310, 16
        %vm315 = vcmp.lt.s32.totalorder %v311, 16
        %vm316 = vmand %vm312, %vm314
        %vm317 = vmand %vm313, %vm315
        %v318 = vld [vmem:[%s237] sm:$0xf]
        %v319 = vld [vmem:[%s237 + $0x4] sm:$0xf]
        %v320 = vunpack.c.l.bf16 %v318
        %v321 = vunpack.c.l.bf16 %v319
        %v322 = vld [vmem:[#allocation5] sm:$0xf]
        %v323 = vld [vmem:[#allocation5 + $0x4] sm:$0xf]
        %v324 = vld [vmem:[#allocation5 + $0x8] sm:$0xf]
        %v325 = vld [vmem:[#allocation5 + $0xc] sm:$0xf]
        %v326 = vrot.slane %v320, 7
        %v327 = vrot.slane %v321, 7
        %vm328 = vcmp.lt.s32.totalorder %v276, 1
        %v329 = vsel %vm328, %v326, %v327
        %v330 = vsel %vm328, %v327, %v326
        %v331 = vsel %vm308, 1, 0
        %v332 = vsel %vm309, 1, 0
        %vm333 = vcmp.eq.s32.totalorder %v331, 1
        %vm334 = vcmp.eq.s32.totalorder %v332, 1
        %v335 = vsel %vm333, %v330, 0.0
        %v336 = vsel %vm334, %v329, 0.0
        %v337 = vpack.c.bf16 %v336, %v335
        %v338 = vld [vmem:[#allocation5 + $0x10] sm:$0xf]
        %v339 = vld [vmem:[#allocation5 + $0x14] sm:$0xf]
        %v340 = vld [vmem:[#allocation5 + $0x18] sm:$0xf]
        %v341 = vld [vmem:[#allocation5 + $0x1c] sm:$0xf]
        %v344 = vunpack.c.l.b16 %v318
        %v345 = vunpack.c.l.b16 %v319
        %v346 = vpack.c.b16 %v345, %v344
        %v351 = vunpack.c.l.b16 %v338
        %v352 = vunpack.c.l.b16 %v339
        %v353 = vunpack.c.l.b16 %v340
        %v354 = vunpack.c.l.b16 %v341
        %v355 = vpack.c.b16 %v352, %v351
        %v356 = vpack.c.b16 %v354, %v353
        %vm359 = vcmask 261120
        %v361 = vsel %vm359, %v346, 0
        %363 = vmatprep.subr.bf16.mxu0 0
        %364 = vmatpush1.bf16.msra.mxu0 %v355
        %365 = vmatprep.subr.bf16.mxu0 0
        %366 = vmatpush1.bf16.msra.mxu0 %v356
        %367 = vmatprep.subr.bf16.mxu0 0
        %368 = vmatpush1.bf16.msra.mxu0 0
        %369 = vmatprep.subr.bf16.mxu0 0
        %370 = vmatpush1.bf16.msra.mxu0 0
        %371 = vmatprep.subr.bf16.mxu0 0
        %372 = vmatpush1.bf16.msra.mxu0 0
        %373 = vmatprep.subr.bf16.mxu0 0
        %374 = vmatpush1.bf16.msra.mxu0 0
        %375 = vmatprep.subr.bf16.mxu0 0
        %376 = vmatpush1.bf16.msra.mxu0 0
        %377 = vmatprep.subr.bf16.mxu0 0
        %378 = vmatpush1.bf16.msra.mxu0 0
        %379 = vmatprep.subr.bf16.mxu0 0
        %380 = vmatpush1.bf16.msra.mxu0 0
        %381 = vmatprep.subr.bf16.mxu0 0
        %382 = vmatpush1.bf16.msra.mxu0 0
        %383 = vmatprep.subr.bf16.mxu0 0
        %384 = vmatpush1.bf16.msra.mxu0 0
        %385 = vmatprep.subr.bf16.mxu0 0
        %386 = vmatpush1.bf16.msra.mxu0 0
        %387 = vmatprep.subr.bf16.mxu0 0
        %388 = vmatpush1.bf16.msra.mxu0 0
        %389 = vmatprep.subr.bf16.mxu0 0
        %390 = vmatpush1.bf16.msra.mxu0 0
        %391 = vmatprep.subr.bf16.mxu0 0
        %392 = vmatpush1.bf16.msra.mxu0 0
        %393 = vmatprep.subr.bf16.mxu0 0
        %394 = vmatpush1.bf16.msra.mxu0 0
        %395 = vmatprep.mubr.bf16.mxu0 0
        %396 = vmatmul.mubr.bf16.gmra.mrb[0].mxu0 %v361
        %v397 = vpop.f32.mrb[0].mxu0
        %v398 = vadd.f32 0.0, %v397
        %v399 = vpop.f32.mrb[0].mxu0
        %v400 = vpop.f32.mrb[0].mxu0
        %v401 = vadd.f32 0.0, %v400
        %v402 = vpop.f32.mrb[0].mxu0
        %403 = vdwg.mxu0
        %v408 = vunpack.c.l.b16 %v322
        %v409 = vunpack.c.l.b16 %v323
        %v410 = vunpack.c.l.b16 %v324
        %v411 = vunpack.c.l.b16 %v325
        %v412 = vpack.c.b16 %v409, %v408
        %v413 = vpack.c.b16 %v411, %v410
        %v417 = vsel %vm359, %v337, 0
        %419 = vmatprep.subr.bf16.mxu0 0
        %420 = vmatpush1.bf16.msra.mxu0 %v412
        %421 = vmatprep.subr.bf16.mxu0 0
        %422 = vmatpush1.bf16.msra.mxu0 %v413
        %423 = vmatprep.subr.bf16.mxu0 0
        %424 = vmatpush1.bf16.msra.mxu0 0
        %425 = vmatprep.subr.bf16.mxu0 0
        %426 = vmatpush1.bf16.msra.mxu0 0
        %427 = vmatprep.subr.bf16.mxu0 0
        %428 = vmatpush1.bf16.msra.mxu0 0
        %429 = vmatprep.subr.bf16.mxu0 0
        %430 = vmatpush1.bf16.msra.mxu0 0
        %431 = vmatprep.subr.bf16.mxu0 0
        %432 = vmatpush1.bf16.msra.mxu0 0
        %433 = vmatprep.subr.bf16.mxu0 0
        %434 = vmatpush1.bf16.msra.mxu0 0
        %435 = vmatprep.subr.bf16.mxu0 0
        %436 = vmatpush1.bf16.msra.mxu0 0
        %437 = vmatprep.subr.bf16.mxu0 0
        %438 = vmatpush1.bf16.msra.mxu0 0
        %439 = vmatprep.subr.bf16.mxu0 0
        %440 = vmatpush1.bf16.msra.mxu0 0
        %441 = vmatprep.subr.bf16.mxu0 0
        %442 = vmatpush1.bf16.msra.mxu0 0
        %443 = vmatprep.subr.bf16.mxu0 0
        %444 = vmatpush1.bf16.msra.mxu0 0
        %445 = vmatprep.subr.bf16.mxu0 0
        %446 = vmatpush1.bf16.msra.mxu0 0
        %447 = vmatprep.subr.bf16.mxu0 0
        %448 = vmatpush1.bf16.msra.mxu0 0
        %449 = vmatprep.subr.bf16.mxu0 0
        %450 = vmatpush1.bf16.msra.mxu0 0
        %451 = vmatprep.mubr.bf16.mxu0 0
        %452 = vmatmul.mubr.bf16.gmra.mrb[0].mxu0 %v417
        %v453 = vpop.f32.mrb[0].mxu0
        %v454 = vadd.f32 %v398, %v453
        %v455 = vpop.f32.mrb[0].mxu0
        %v456 = vpop.f32.mrb[0].mxu0
        %v457 = vadd.f32 %v401, %v456
        %v458 = vpop.f32.mrb[0].mxu0
        %459 = vdwg.mxu0
        %v460 = vld [vmem:[#allocation5 + $0x20] sm:$0xf]
        %v461 = vld [vmem:[#allocation5 + $0x24] sm:$0xf]
        %v462 = vld [vmem:[#allocation5 + $0x28] sm:$0xf]
        %v463 = vld [vmem:[#allocation5 + $0x2c] sm:$0xf]
        %v464 = vrot.slane %v320, 1
        %v465 = vrot.slane %v321, 1
        %vm466 = vcmp.lt.s32.totalorder %v276, 7
        %v467 = vsel %vm466, %v464, %v465
        %v468 = vsel %vm466, %v465, %v464
        %v469 = vsel %vm316, 1, 0
        %v470 = vsel %vm317, 1, 0
        %vm471 = vcmp.eq.s32.totalorder %v469, 1
        %vm472 = vcmp.eq.s32.totalorder %v470, 1
        %v473 = vsel %vm471, %v467, 0.0
        %v474 = vsel %vm472, %v468, 0.0
        %v475 = vpack.c.bf16 %v474, %v473
        %v480 = vunpack.c.l.b16 %v460
        %v481 = vunpack.c.l.b16 %v461
        %v482 = vunpack.c.l.b16 %v462
        %v483 = vunpack.c.l.b16 %v463
        %v484 = vpack.c.b16 %v481, %v480
        %v485 = vpack.c.b16 %v483, %v482
        %v489 = vsel %vm359, %v475, 0
        %491 = vmatprep.subr.bf16.mxu0 0
        %492 = vmatpush1.bf16.msra.mxu0 %v484
        %493 = vmatprep.subr.bf16.mxu0 0
        %494 = vmatpush1.bf16.msra.mxu0 %v485
        %495 = vmatprep.subr.bf16.mxu0 0
        %496 = vmatpush1.bf16.msra.mxu0 0
        %497 = vmatprep.subr.bf16.mxu0 0
        %498 = vmatpush1.bf16.msra.mxu0 0
        %499 = vmatprep.subr.bf16.mxu0 0
        %500 = vmatpush1.bf16.msra.mxu0 0
        %501 = vmatprep.subr.bf16.mxu0 0
        %502 = vmatpush1.bf16.msra.mxu0 0
        %503 = vmatprep.subr.bf16.mxu0 0
        %504 = vmatpush1.bf16.msra.mxu0 0
        %505 = vmatprep.subr.bf16.mxu0 0
        %506 = vmatpush1.bf16.msra.mxu0 0
        %507 = vmatprep.subr.bf16.mxu0 0
        %508 = vmatpush1.bf16.msra.mxu0 0
        %509 = vmatprep.subr.bf16.mxu0 0
        %510 = vmatpush1.bf16.msra.mxu0 0
        %511 = vmatprep.subr.bf16.mxu0 0
        %512 = vmatpush1.bf16.msra.mxu0 0
        %513 = vmatprep.subr.bf16.mxu0 0
        %514 = vmatpush1.bf16.msra.mxu0 0
        %515 = vmatprep.subr.bf16.mxu0 0
        %516 = vmatpush1.bf16.msra.mxu0 0
        %517 = vmatprep.subr.bf16.mxu0 0
        %518 = vmatpush1.bf16.msra.mxu0 0
        %519 = vmatprep.subr.bf16.mxu0 0
        %520 = vmatpush1.bf16.msra.mxu0 0
        %521 = vmatprep.subr.bf16.mxu0 0
        %522 = vmatpush1.bf16.msra.mxu0 0
        %523 = vmatprep.mubr.bf16.mxu0 0
        %524 = vmatmul.mubr.bf16.gmra.mrb[0].mxu0 %v489
        %v525 = vpop.f32.mrb[0].mxu0
        %v526 = vadd.f32 0.0, %v525
        %v527 = vpop.f32.mrb[0].mxu0
        %v528 = vpop.f32.mrb[0].mxu0
        %v529 = vadd.f32 0.0, %v528
        %v530 = vpop.f32.mrb[0].mxu0
        %531 = vdwg.mxu0
        %v532 = vadd.f32 %v454, %v526
        %v533 = vadd.f32 %v457, %v529
        %v534 = vld [vmem:[%s3] sm:$0x1]
        %v536 = vlaneseq
        %v537 = vshrl.u32 %v536, 7
        %v538 = vsub.s32 0, %v537
        %v539 = vrot.slane %v534, %v538
        %v541 = vadd.f32 %v532, %v539
        %v542 = vadd.f32 %v533, %v539
        %v543 = vmax.f32 %v541, 0.0
        %v544 = vmax.f32 %v542, 0.0
        %v545 = vld [vmem:[#allocation7] sm:$0xf]
        %v546 = vld [vmem:[#allocation7 + $0x4] sm:$0xf]
        %v547 = vld [vmem:[#allocation7 + $0x8] sm:$0xf]
        %v548 = vld [vmem:[#allocation7 + $0xc] sm:$0xf]
        %v549 = vld [vmem:[#allocation7 + $0x10] sm:$0xf]
        %v550 = vld [vmem:[#allocation7 + $0x14] sm:$0xf]
        %v551 = vld [vmem:[#allocation7 + $0x18] sm:$0xf]
        %v552 = vld [vmem:[#allocation7 + $0x1c] sm:$0xf]
        %v553 = vld [vmem:[#allocation7 + $0x20] sm:$0xf]
        %v554 = vld [vmem:[#allocation7 + $0x24] sm:$0xf]
        %v555 = vld [vmem:[#allocation7 + $0x28] sm:$0xf]
        %v556 = vld [vmem:[#allocation7 + $0x2c] sm:$0xf]
        %v557 = vrot.slane %v543, 7
        %v558 = vrot.slane %v544, 7
        %v559 = vsel %vm328, %v557, %v558
        %v560 = vsel %vm328, %v558, %v557
        %v561 = vsel %vm333, %v560, 0.0
        %v562 = vsel %vm334, %v559, 0.0
        %v563 = vpack.c.bf16 %v562, %v561
        %v564 = vld [vmem:[#allocation7 + $0x30] sm:$0xf]
        %v565 = vld [vmem:[#allocation7 + $0x34] sm:$0xf]
        %v566 = vld [vmem:[#allocation7 + $0x38] sm:$0xf]
        %v567 = vld [vmem:[#allocation7 + $0x3c] sm:$0xf]
        %v568 = vld [vmem:[#allocation7 + $0x40] sm:$0xf]
        %v569 = vld [vmem:[#allocation7 + $0x44] sm:$0xf]
        %v570 = vld [vmem:[#allocation7 + $0x48] sm:$0xf]
        %v571 = vld [vmem:[#allocation7 + $0x4c] sm:$0xf]
        %v572 = vld [vmem:[#allocation7 + $0x50] sm:$0xf]
        %v573 = vld [vmem:[#allocation7 + $0x54] sm:$0xf]
        %v574 = vld [vmem:[#allocation7 + $0x58] sm:$0xf]
        %v575 = vld [vmem:[#allocation7 + $0x5c] sm:$0xf]
        %v576 = vpack.c.bf16 %v544, %v543
        %v589 = vunpack.c.l.b16 %v564
        %v590 = vunpack.c.l.b16 %v565
        %v591 = vunpack.c.l.b16 %v566
        %v592 = vunpack.c.l.b16 %v567
        %v593 = vunpack.c.l.b16 %v568
        %v594 = vunpack.c.l.b16 %v569
        %v595 = vunpack.c.l.b16 %v570
        %v596 = vunpack.c.l.b16 %v571
        %v597 = vunpack.c.l.b16 %v572
        %v598 = vunpack.c.l.b16 %v573
        %v599 = vunpack.c.l.b16 %v574
        %v600 = vunpack.c.l.b16 %v575
        %v601 = vpack.c.b16 %v590, %v589
        %v602 = vpack.c.b16 %v592, %v591
        %v603 = vpack.c.b16 %v594, %v593
        %v604 = vpack.c.b16 %v596, %v595
        %v605 = vpack.c.b16 %v598, %v597
        %v606 = vpack.c.b16 %v600, %v599
        %vm613 = vcmask 785408
        %v615 = vsel %vm613, %v576, 0
        %617 = vmatprep.subr.bf16.mxu0 0
        %618 = vmatpush1.bf16.msra.mxu0 %v601
        %619 = vmatprep.subr.bf16.mxu0 0
        %620 = vmatpush1.bf16.msra.mxu0 %v602
        %621 = vmatprep.subr.bf16.mxu0 0
        %622 = vmatpush1.bf16.msra.mxu0 %v603
        %623 = vmatprep.subr.bf16.mxu0 0
        %624 = vmatpush1.bf16.msra.mxu0 %v604
        %625 = vmatprep.subr.bf16.mxu0 0
        %626 = vmatpush1.bf16.msra.mxu0 %v605
        %627 = vmatprep.subr.bf16.mxu0 0
        %628 = vmatpush1.bf16.msra.mxu0 %v606
        %629 = vmatprep.subr.bf16.mxu0 0
        %630 = vmatpush1.bf16.msra.mxu0 0
        %631 = vmatprep.subr.bf16.mxu0 0
        %632 = vmatpush1.bf16.msra.mxu0 0
        %633 = vmatprep.subr.bf16.mxu0 0
        %634 = vmatpush1.bf16.msra.mxu0 0
        %635 = vmatprep.subr.bf16.mxu0 0
        %636 = vmatpush1.bf16.msra.mxu0 0
        %637 = vmatprep.subr.bf16.mxu0 0
        %638 = vmatpush1.bf16.msra.mxu0 0
        %639 = vmatprep.subr.bf16.mxu0 0
        %640 = vmatpush1.bf16.msra.mxu0 0
        %641 = vmatprep.subr.bf16.mxu0 0
        %642 = vmatpush1.bf16.msra.mxu0 0
        %643 = vmatprep.subr.bf16.mxu0 0
        %644 = vmatpush1.bf16.msra.mxu0 0
        %645 = vmatprep.subr.bf16.mxu0 0
        %646 = vmatpush1.bf16.msra.mxu0 0
        %647 = vmatprep.subr.bf16.mxu0 0
        %648 = vmatpush1.bf16.msra.mxu0 0
        %649 = vmatprep.mubr.bf16.mxu0 0
        %650 = vmatmul.mubr.bf16.gmra.mrb[0].mxu0 %v615
        %v651 = vpop.f32.mrb[0].mxu0
        %v652 = vadd.f32 0.0, %v651
        %v653 = vpop.f32.mrb[0].mxu0
        %v654 = vpop.f32.mrb[0].mxu0
        %v655 = vadd.f32 0.0, %v654
        %v656 = vpop.f32.mrb[0].mxu0
        %657 = vdwg.mxu0
        %v670 = vunpack.c.l.b16 %v545
        %v671 = vunpack.c.l.b16 %v546
        %v672 = vunpack.c.l.b16 %v547
        %v673 = vunpack.c.l.b16 %v548
        %v674 = vunpack.c.l.b16 %v549
        %v675 = vunpack.c.l.b16 %v550
        %v676 = vunpack.c.l.b16 %v551
        %v677 = vunpack.c.l.b16 %v552
        %v678 = vunpack.c.l.b16 %v553
        %v679 = vunpack.c.l.b16 %v554
        %v680 = vunpack.c.l.b16 %v555
        %v681 = vunpack.c.l.b16 %v556
        %v682 = vpack.c.b16 %v671, %v670
        %v683 = vpack.c.b16 %v673, %v672
        %v684 = vpack.c.b16 %v675, %v674
        %v685 = vpack.c.b16 %v677, %v676
        %v686 = vpack.c.b16 %v679, %v678
        %v687 = vpack.c.b16 %v681, %v680
        %v695 = vsel %vm613, %v563, 0
        %697 = vmatprep.subr.bf16.mxu0 0
        %698 = vmatpush1.bf16.msra.mxu0 %v682
        %699 = vmatprep.subr.bf16.mxu0 0
        %700 = vmatpush1.bf16.msra.mxu0 %v683
        %701 = vmatprep.subr.bf16.mxu0 0
        %702 = vmatpush1.bf16.msra.mxu0 %v684
        %703 = vmatprep.subr.bf16.mxu0 0
        %704 = vmatpush1.bf16.msra.mxu0 %v685
        %705 = vmatprep.subr.bf16.mxu0 0
        %706 = vmatpush1.bf16.msra.mxu0 %v686
        %707 = vmatprep.subr.bf16.mxu0 0
        %708 = vmatpush1.bf16.msra.mxu0 %v687
        %709 = vmatprep.subr.bf16.mxu0 0
        %710 = vmatpush1.bf16.msra.mxu0 0
        %711 = vmatprep.subr.bf16.mxu0 0
        %712 = vmatpush1.bf16.msra.mxu0 0
        %713 = vmatprep.subr.bf16.mxu0 0
        %714 = vmatpush1.bf16.msra.mxu0 0
        %715 = vmatprep.subr.bf16.mxu0 0
        %716 = vmatpush1.bf16.msra.mxu0 0
        %717 = vmatprep.subr.bf16.mxu0 0
        %718 = vmatpush1.bf16.msra.mxu0 0
        %719 = vmatprep.subr.bf16.mxu0 0
        %720 = vmatpush1.bf16.msra.mxu0 0
        %721 = vmatprep.subr.bf16.mxu0 0
        %722 = vmatpush1.bf16.msra.mxu0 0
        %723 = vmatprep.subr.bf16.mxu0 0
        %724 = vmatpush1.bf16.msra.mxu0 0
        %725 = vmatprep.subr.bf16.mxu0 0
        %726 = vmatpush1.bf16.msra.mxu0 0
        %727 = vmatprep.subr.bf16.mxu0 0
        %728 = vmatpush1.bf16.msra.mxu0 0
        %729 = vmatprep.mubr.bf16.mxu0 0
        %730 = vmatmul.mubr.bf16.gmra.mrb[0].mxu0 %v695
        %v731 = vpop.f32.mrb[0].mxu0
        %v732 = vadd.f32 %v652, %v731
        %v733 = vpop.f32.mrb[0].mxu0
        %v734 = vpop.f32.mrb[0].mxu0
        %v735 = vadd.f32 %v655, %v734
        %v736 = vpop.f32.mrb[0].mxu0
        %737 = vdwg.mxu0
        %v738 = vld [vmem:[#allocation7 + $0x60] sm:$0xf]
        %v739 = vld [vmem:[#allocation7 + $0x64] sm:$0xf]
        %v740 = vld [vmem:[#allocation7 + $0x68] sm:$0xf]
        %v741 = vld [vmem:[#allocation7 + $0x6c] sm:$0xf]
        %v742 = vld [vmem:[#allocation7 + $0x70] sm:$0xf]
        %v743 = vld [vmem:[#allocation7 + $0x74] sm:$0xf]
        %v744 = vld [vmem:[#allocation7 + $0x78] sm:$0xf]
        %v745 = vld [vmem:[#allocation7 + $0x7c] sm:$0xf]
        %v746 = vld [vmem:[#allocation7 + $0x80] sm:$0xf]
        %v747 = vld [vmem:[#allocation7 + $0x84] sm:$0xf]
        %v748 = vld [vmem:[#allocation7 + $0x88] sm:$0xf]
        %v749 = vld [vmem:[#allocation7 + $0x8c] sm:$0xf]
        %v750 = vrot.slane %v543, 1
        %v751 = vrot.slane %v544, 1
        %v752 = vsel %vm466, %v750, %v751
        %v753 = vsel %vm466, %v751, %v750
        %v754 = vsel %vm471, %v752, 0.0
        %v755 = vsel %vm472, %v753, 0.0
        %v756 = vpack.c.bf16 %v755, %v754
        %v769 = vunpack.c.l.b16 %v738
        %v770 = vunpack.c.l.b16 %v739
        %v771 = vunpack.c.l.b16 %v740
        %v772 = vunpack.c.l.b16 %v741
        %v773 = vunpack.c.l.b16 %v742
        %v774 = vunpack.c.l.b16 %v743
        %v775 = vunpack.c.l.b16 %v744
        %v776 = vunpack.c.l.b16 %v745
        %v777 = vunpack.c.l.b16 %v746
        %v778 = vunpack.c.l.b16 %v747
        %v779 = vunpack.c.l.b16 %v748
        %v780 = vunpack.c.l.b16 %v749
        %v781 = vpack.c.b16 %v770, %v769
        %v782 = vpack.c.b16 %v772, %v771
        %v783 = vpack.c.b16 %v774, %v773
        %v784 = vpack.c.b16 %v776, %v775
        %v785 = vpack.c.b16 %v778, %v777
        %v786 = vpack.c.b16 %v780, %v779
        %v794 = vsel %vm613, %v756, 0
        %796 = vmatprep.subr.bf16.mxu0 0
        %797 = vmatpush1.bf16.msra.mxu0 %v781
        %798 = vmatprep.subr.bf16.mxu0 0
        %799 = vmatpush1.bf16.msra.mxu0 %v782
        %800 = vmatprep.subr.bf16.mxu0 0
        %801 = vmatpush1.bf16.msra.mxu0 %v783
        %802 = vmatprep.subr.bf16.mxu0 0
        %803 = vmatpush1.bf16.msra.mxu0 %v784
        %804 = vmatprep.subr.bf16.mxu0 0
        %805 = vmatpush1.bf16.msra.mxu0 %v785
        %806 = vmatprep.subr.bf16.mxu0 0
        %807 = vmatpush1.bf16.msra.mxu0 %v786
        %808 = vmatprep.subr.bf16.mxu0 0
        %809 = vmatpush1.bf16.msra.mxu0 0
        %810 = vmatprep.subr.bf16.mxu0 0
        %811 = vmatpush1.bf16.msra.mxu0 0
        %812 = vmatprep.subr.bf16.mxu0 0
        %813 = vmatpush1.bf16.msra.mxu0 0
        %814 = vmatprep.subr.bf16.mxu0 0
        %815 = vmatpush1.bf16.msra.mxu0 0
        %816 = vmatprep.subr.bf16.mxu0 0
        %817 = vmatpush1.bf16.msra.mxu0 0
        %818 = vmatprep.subr.bf16.mxu0 0
        %819 = vmatpush1.bf16.msra.mxu0 0
        %820 = vmatprep.subr.bf16.mxu0 0
        %821 = vmatpush1.bf16.msra.mxu0 0
        %822 = vmatprep.subr.bf16.mxu0 0
        %823 = vmatpush1.bf16.msra.mxu0 0
        %824 = vmatprep.subr.bf16.mxu0 0
        %825 = vmatpush1.bf16.msra.mxu0 0
        %826 = vmatprep.subr.bf16.mxu0 0
        %827 = vmatpush1.bf16.msra.mxu0 0
        %828 = vmatprep.mubr.bf16.mxu0 0
        %829 = vmatmul.mubr.bf16.gmra.mrb[0].mxu0 %v794
        %v830 = vpop.f32.mrb[0].mxu0
        %v831 = vadd.f32 0.0, %v830
        %v832 = vpop.f32.mrb[0].mxu0
        %v833 = vpop.f32.mrb[0].mxu0
        %v834 = vadd.f32 0.0, %v833
        %v835 = vpop.f32.mrb[0].mxu0
        %836 = vdwg.mxu0
        %v837 = vadd.f32 %v732, %v831
        %v838 = vadd.f32 %v735, %v834
        %v839 = vld [vmem:[%s4] sm:$0x1]
        %v841 = vlaneseq
        %v842 = vshrl.u32 %v841, 7
        %v843 = vsub.s32 0, %v842
        %v844 = vrot.slane %v839, %v843
        %v846 = vadd.f32 %v837, %v844
        %v847 = vadd.f32 %v838, %v844
        %848 = vst [vmem:[%s271] sm:$0xff] %v846
        %849 = vst [vmem:[%s271 + $0x8] sm:$0xff] %v847
        %s850 = sand.u32 %s141, 1
        %s851 = scalar_lea.sflag [#allocation4], %s850
        %s852 = sand.u32 %s141, 1
        %s853 = smul.addr %s852, 16
        %s854 = scalar_lea.vmem [#allocation8], %s853
        // Predicated region
        $region53: #{tpu_custom_call.1} parent=39 // pred_check
          %p855 = pneg %p151
        $region54: #{tpu_custom_call.1} parent=39 // pred_check_branch
          %857 = sbr.rel (%p855) target = $region56
        $region55: #{tpu_custom_call.1} parent=39 // pred_region
          %s858 = smul.u32 2, %s23
          %s860 = ssub.s32 256, 256
          %861 = vsyncadd %s851, %s860
          %s862 = smul.addr %s858, 128
          %s863 = scalar_lea.hbm %s5, %s862
          %s864 = sshll.u32 %s854, 4
          %s865 = int_to_ptr.vmem [resolvable:$true] %s864
          %870 = dma.vmem_to_hbm [thread:$0]  %s865, 256, %s863, %s851, 128, 128, 8
        $region56: #{tpu_custom_call.1} parent=39 // pred_fallthru
          _
      $region40: #{tpu_custom_call.1} parent=5 // pred_fallthru
        _
      %p871 = scmp.le.s32.totalorder 2, %s18
      // Predicated region
      $region57: #{tpu_custom_call.1} parent=5 // pred_check
        %p872 = pneg %p871
      $region58: #{tpu_custom_call.1} parent=5 // pred_check_branch
        %874 = sbr.rel (%p872) target = $region60
      $region59: #{tpu_custom_call.1} parent=5 // pred_region
        %s875 = ssub.s32 %s18, 2
        // Predicated region
        $region61: #{tpu_custom_call.1} parent=59 // pred_check
          %p876 = pneg %p157
        $region62: #{tpu_custom_call.1} parent=59 // pred_check_branch
          %878 = sbr.rel (%p876) target = $region64
        $region63: #{tpu_custom_call.1} parent=59 // pred_region
          %s879 = sand.u32 %s142, 1
          %s880 = scalar_lea.sflag [#allocation4], %s879
          %s881 = sand.u32 %s142, 1
          %s882 = smul.addr %s881, 16
          %s883 = scalar_lea.vmem [#allocation8], %s882
          %884 = dma.done %s880, 256
        $region64: #{tpu_custom_call.1} parent=59 // pred_fallthru
          _
      $region60: #{tpu_custom_call.1} parent=5 // pred_fallthru
        _
    $region6: #{tpu_custom_call.1} parent=1 // loop_footer
      %s22 = sadd.s32 1, %s18
    $region7: #{tpu_custom_call.1} parent=1 // loop_footer_branch
      %17 = sbr.rel target = $region3
    $region8: #{tpu_custom_call.1} parent=1 // loop_exit
      _
    %885 = vsyncpa [#allocation3], 1
    %s886 = scalar_lea.sflag [#allocation3], 1
    %887 = vsyncpa %s886, 1
    %888 = vsyncpa [#allocation6], 1
    %889 = vsyncpa [#allocation4], 1
    %s890 = scalar_lea.sflag [#allocation4], 1
    %891 = vsyncpa %s890, 1

</llo_original>
